<compile_context>
chip_gen: v7x
topology: tpu7x:2x2x1
jax: 0.10.0
libtpu: 0.0.40
codegen_flags: <defaults>
</compile_context>

<pallas_src>
import jax
import jax.numpy as jnp
from jax.experimental import pallas as pl
from jax.experimental.pallas import tpu as pltpu


def _nabla_kernel(w_ref, x_ref, o_ref):
    """VPU/XLU-only kernel on the flat interleaved view.

    w_ref : SMEM (4,) f32 = [w00, w01, w10, w11]  (row-major true_dy)
    x_ref : VMEM (S, 128) tile of flat y: even lanes hold y[:,0], odd y[:,1]
    o_ref : VMEM (S, 128) tile of flat out (same interleaving)
    """
    x = x_ref[...].astype(jnp.float32)
    w00 = w_ref[0]
    w01 = w_ref[1]
    w10 = w_ref[2]
    w11 = w_ref[3]

    lane_idx = jax.lax.broadcasted_iota(jnp.int32, x.shape, 1)
    even = (lane_idx % 2) == 0                    # lane holds y[:,0] ?

    # out[:,0] = y0*w00 + y1*w10   (lives on even lanes)
    # out[:,1] = y0*w01 + y1*w11   (lives on odd  lanes)
    w_self = jnp.where(even, w00, w11)            # weight applied to x itself
    w_buddy = jnp.where(even, w10, w01)           # weight applied to pair buddy
    # Pair buddy x[i^1]: x[i+1] on even lanes, x[i-1] on odd lanes.  Rolls are
    # circular within each 128-lane row; wrapped lanes are never selected
    # (lane 127 is always odd, lane 0 always even).
    buddy = jnp.where(
        even,
        pltpu.roll(x, shift=127, axis=1),         # == jnp.roll(x, -1): x[i+1]
        pltpu.roll(x, shift=1, axis=1),           #                     x[i-1]
    )
    o_ref[...] = (x * w_self + buddy * w_buddy).astype(o_ref.dtype)


def nabla_forward(t, y, true_dy, *, max_block_rows=4096):
    """Equivalent of Nabla.forward(t, y) == torch.mm(y, true_dy)."""
    del t  # unused, matching the reference module
    batch, k = y.shape
    assert k == 2 and true_dy.shape == (2, 2)

    lane = 128
    n = batch * 2
    rows = pl.cdiv(n, lane)
    pad = rows * lane - n

    flat = y.reshape(-1)                          # free (row-major contiguous)
    if pad:
        flat = jnp.pad(flat, (0, pad))            # only when batch % 64 != 0
    x2d = flat.reshape(rows, lane)                # free

    if rows <= 8:
        s = rows                                  # single block == full array
    else:
        # ~half the rows per block (>=2 grid steps for v7x's 2 TCs), capped at
        # 4096 rows (2 MiB f32 block), rounded up to a multiple of 8 sublanes.
        s = min(max_block_rows, ((pl.cdiv(rows, 2) + 7) // 8) * 8)
    num_blocks = pl.cdiv(rows, s)                 # ragged last block is masked

    w_flat = true_dy.astype(jnp.float32).reshape(-1)   # (4,) -> SMEM scalars

    out2d = pl.pallas_call(
        _nabla_kernel,
        out_shape=jax.ShapeDtypeStruct((rows, lane), y.dtype),
        grid=(num_blocks,),
        in_specs=[
            pl.BlockSpec(memory_space=pltpu.MemorySpace.SMEM),   # true_dy
            pl.BlockSpec((s, lane), lambda i: (i, 0)),           # y tile
        ],
        out_specs=pl.BlockSpec((s, lane), lambda i: (i, 0)),
        compiler_params=pltpu.CompilerParams(
            dimension_semantics=("parallel",),
        ),
    )(w_flat, x2d)

    out_flat = out2d.reshape(-1)
    if pad:
        out_flat = out_flat[:n]
    return out_flat.reshape(batch, 2)


if __name__ == "__main__":
    # Deterministic constant from the module definition.
    true_dy = jnp.array([[-0.1, -1.0], [1.0, -0.1]], dtype=jnp.float32)
    t = jnp.float32(0.0)  # unused by forward, present for signature parity

    fwd = jax.jit(nabla_forward)
    key = jax.random.PRNGKey(0)

    # batch=8: tiny / padded single-block path.  batch=1000: padded, 2-block
    # pipelined path (rows=16, block=8).
    for batch in (8, 1000):
        y = jax.random.normal(
            jax.random.fold_in(key, batch), (batch, 2), dtype=jnp.float32)
        out = jax.block_until_ready(fwd(t, y, true_dy))
        ref = y[:, 0:1] * true_dy[0] + y[:, 1:2] * true_dy[1]  # == y @ true_dy
        assert out.shape == (batch, 2)
        assert jnp.allclose(out, ref, atol=1e-6, rtol=1e-6), "mismatch vs ref"

    print("KERNEL_OK")
</pallas_src>

<mosaic_0001>
module attributes {stable_mosaic.version = 11 : i64} {
  func.func @_nabla_kernel(%arg0: i32, %arg1: memref<4xf32, #tpu.memory_space<smem>>, %arg2: memref<1x128xf32, #tpu.memory_space<vmem>>, %arg3: memref<1x128xf32, #tpu.memory_space<vmem>>) attributes {dimension_semantics = [#tpu.dimension_semantics<parallel>], iteration_bounds = array<i64: 1>, scalar_prefetch = 0 : i64, scratch_operands = 0 : i64, tpu.core_type = #tpu.core_type<tc>, window_params = [{transform_indices = @transform_0, window_bounds = array<i64: 4>}, {transform_indices = @transform_1, window_bounds = array<i64: 1, 128>}, {transform_indices = @transform_2, window_bounds = array<i64: 1, 128>}]} {
    %c0 = arith.constant 0 : index
    %c0_0 = arith.constant 0 : index
    %0 = vector.load %arg2[%c0, %c0_0] : memref<1x128xf32, #tpu.memory_space<vmem>>, vector<1x128xf32>
    %c0_1 = arith.constant 0 : index
    %1 = memref.load %arg1[%c0_1] : memref<4xf32, #tpu.memory_space<smem>>
    %c1 = arith.constant 1 : index
    %2 = memref.load %arg1[%c1] : memref<4xf32, #tpu.memory_space<smem>>
    %c2 = arith.constant 2 : index
    %3 = memref.load %arg1[%c2] : memref<4xf32, #tpu.memory_space<smem>>
    %c3 = arith.constant 3 : index
    %4 = memref.load %arg1[%c3] : memref<4xf32, #tpu.memory_space<smem>>
    %5 = tpu.iota {dimensions = array<i32: 1>} : vector<1x128xi32>
    %c2_i32 = arith.constant 2 : i32
    %c0_i32 = arith.constant 0 : i32
    %6 = arith.cmpi eq, %c2_i32, %c0_i32 : i32
    %c1_i32 = arith.constant 1 : i32
    %7 = arith.select %6, %c1_i32, %c2_i32 : i32
    %8 = vector.broadcast %7 : i32 to vector<1x128xi32>
    %9 = arith.remsi %5, %8 : vector<1x128xi32>
    %c0_i32_2 = arith.constant 0 : i32
    %10 = vector.broadcast %c0_i32_2 : i32 to vector<1x128xi32>
    %11 = arith.cmpi ne, %9, %10 : vector<1x128xi32>
    %c0_i32_3 = arith.constant 0 : i32
    %12 = vector.broadcast %c0_i32_3 : i32 to vector<1x128xi32>
    %13 = arith.cmpi slt, %9, %12 : vector<1x128xi32>
    %c0_i32_4 = arith.constant 0 : i32
    %14 = arith.cmpi slt, %7, %c0_i32_4 : i32
    %15 = vector.broadcast %14 : i1 to vector<1x128xi1>
    %16 = vector.broadcast %15 : vector<1x128xi1> to vector<1x128xi1>
    %17 = arith.xori %13, %16 : vector<1x128xi1>
    %18 = arith.andi %17, %11 : vector<1x128xi1>
    %19 = vector.broadcast %7 : i32 to vector<1x128xi32>
    %20 = arith.addi %9, %19 : vector<1x128xi32>
    %21 = arith.select %18, %20, %9 : vector<1x128xi1>, vector<1x128xi32>
    %c0_i32_5 = arith.constant 0 : i32
    %22 = vector.broadcast %c0_i32_5 : i32 to vector<1x128xi32>
    %23 = arith.cmpi eq, %21, %22 : vector<1x128xi32>
    %24 = vector.broadcast %1 : f32 to vector<1x128xf32>
    %25 = vector.broadcast %4 : f32 to vector<1x128xf32>
    %26 = arith.select %23, %24, %25 : vector<1x128xi1>, vector<1x128xf32>
    %27 = vector.broadcast %3 : f32 to vector<1x128xf32>
    %28 = vector.broadcast %2 : f32 to vector<1x128xf32>
    %29 = arith.select %23, %27, %28 : vector<1x128xi1>, vector<1x128xf32>
    %c127_i32 = arith.constant 127 : i32
    %30 = tpu.dynamic_rotate %0 by %c127_i32 dim 1 : vector<1x128xf32>, i32 -> vector<1x128xf32>
    %c1_i32_6 = arith.constant 1 : i32
    %31 = tpu.dynamic_rotate %0 by %c1_i32_6 dim 1 : vector<1x128xf32>, i32 -> vector<1x128xf32>
    %32 = arith.select %23, %30, %31 : vector<1x128xi1>, vector<1x128xf32>
    %33 = arith.mulf %0, %26 : vector<1x128xf32>
    %34 = arith.mulf %32, %29 : vector<1x128xf32>
    %35 = arith.addf %33, %34 : vector<1x128xf32>
    %c0_7 = arith.constant 0 : index
    %c0_8 = arith.constant 0 : index
    %36 = vector.load %arg3[%c0_7, %c0_8] : memref<1x128xf32, #tpu.memory_space<vmem>>, vector<1x128xf32>
    tpu.vector_store %arg3[%c0_7, %c0_8], %35 {strides = array<i32>} : memref<1x128xf32, #tpu.memory_space<vmem>>, vector<1x128xf32>,
    return
  }
  func.func @transform_0(%arg0: i32) -> i32 {
    %c0_i32 = arith.constant 0 : i32
    %c0_i32_0 = arith.constant 0 : i32
    return %c0_i32 : i32
  }
  func.func @transform_1(%arg0: i32) -> (i32, i32) {
    %c0_i32 = arith.constant 0 : i32
    %c0_i32_0 = arith.constant 0 : i32
    return %arg0, %c0_i32 : i32, i32
  }
  func.func @transform_2(%arg0: i32) -> (i32, i32) {
    %c0_i32 = arith.constant 0 : i32
    %c0_i32_0 = arith.constant 0 : i32
    return %arg0, %c0_i32 : i32, i32
  }
}

</mosaic_0001>

<llo_original>
// kernel: nabla_forward.1
$region0: #{nabla_forward.1}
  #allocation0 [shape = 'u32[]', space=smem, size = 0x4, offset = 0x4, fixed_abs, tag = 'smem constant byte address 0x4 - core index']
  #allocation1 [shape = 'u32[144,128]{1,0:T(1,128)}', space=vmem, size = 0x12000, scoped, tag = 'internal scratch']
  %s0 = inlined_call_operand.vmem [shape: f32[4], index: 0, kind: input, shape index: {}]
  %s1 = inlined_call_operand.vmem [shape: f32[1,128], index: 1, kind: input, shape index: {}]
  %s2 = inlined_call_operand.vmem [shape: f32[1,128], index: 2, kind: output, shape index: {}]
  %s3 = sld [smem:[#allocation0]]
  $region22: #{nabla_forward.1} parent=0
    _
  %s5 = ssub.s32 1, %s3
  %s6 = scalar_select 0, %s5, %s3
  $region1: #{nabla_forward.1} parent=0
    #allocation2 [shape = 'u8[512]{0}', space=smem, size = 0x200, scoped, tag = 'input window, operand 0, single buffered']
    #allocation3 [shape = 's32[1]{0}', space=sflag, size = 0x4, scoped, tag = 'scoped memory for nabla_forward.1']
    %7 = vsyncpa [#allocation3], 0
    // Predicated region
    $region2: #{nabla_forward.1} parent=1 // pred_check
      _
    $region3: #{nabla_forward.1} parent=1 // pred_check_branch
      %9 = sbr.rel (0) target = $region5
    $region4: #{nabla_forward.1} parent=1 // pred_region
      %s11 = ssub.s32 16, 16
      %12 = vsyncadd [#allocation3], %s11
      %s14 = sshll.u32 %s0, 4
      %s15 = int_to_ptr.vmem [resolvable:$true] %s14
      %17 = dma.vmem_to_smem %s15, 16, [#allocation2], [#allocation3]
    $region5: #{nabla_forward.1} parent=1 // pred_fallthru
      _
    // Predicated region
    $region6: #{nabla_forward.1} parent=1 // pred_check
      _
    $region7: #{nabla_forward.1} parent=1 // pred_check_branch
      %19 = sbr.rel (0) target = $region9
    $region8: #{nabla_forward.1} parent=1 // pred_region
      _
    $region9: #{nabla_forward.1} parent=1 // pred_fallthru
      _
    // Predicated region
    $region10: #{nabla_forward.1} parent=1 // pred_check
      _
    $region11: #{nabla_forward.1} parent=1 // pred_check_branch
      %21 = sbr.rel (0) target = $region13
    $region12: #{nabla_forward.1} parent=1 // pred_region
      %22 = dma.done [#allocation3], 16
    $region13: #{nabla_forward.1} parent=1 // pred_fallthru
      _
    %23 = sfence
    %v24 = vld [vmem:[%s1] sm:$0x1]
    %s25 = sld [smem:[#allocation2]]
    %s26 = sld [smem:[#allocation2 + $0x1]]
    %s27 = sld [smem:[#allocation2 + $0x2]]
    %s28 = sld [smem:[#allocation2 + $0x3]]
    %v29 = vlaneseq
    %v30 = vand.u32 %v29, 127
    %vm31 = vcmp.lt.s32.totalorder %v30, 0
    %v32 = vsub.s32 0, %v30
    %v33 = vsel %vm31, %v32, %v30
    %v34 = vshrl.u32 %v33, 1
    %v35 = vand.u32 %v33, 1
    %v36 = vsub.s32 0, %v35
    %v37 = vsel %vm31, %v36, %v35
    %vm38 = vcmp.ne.s32.totalorder %v37, 0
    %vm39 = vcmp.lt.s32.totalorder %v37, 0
    %vm40 = vmand %vm39, %vm38
    %v41 = vadd.s32 %v37, 2
    %v42 = vsel %vm40, %v41, %v37
    %vm43 = vcmp.eq.s32.totalorder %v42, 0
    %v44 = vstv %s25
    %v45 = vstv %s28
    %v46 = vsel %vm43, %v44, %v45
    %v47 = vstv %s27
    %v48 = vstv %s26
    %v49 = vsel %vm43, %v47, %v48
    %50 = vrot.lane.b32.xlu0 %v24, 127
    %v51 = vpop.permute.xlu0 %50
    %52 = vrot.lane.b32.xlu0 %v24, 1
    %v53 = vpop.permute.xlu0 %52
    %v54 = vsel %vm43, %v51, %v53
    %v55 = vmul.f32 %v24, %v46
    %v56 = vmul.f32 %v54, %v49
    %v57 = vadd.f32 %v55, %v56
    %58 = vst [vmem:[%s2] sm:$0x1] %v57
    // Predicated region
    $region14: #{nabla_forward.1} parent=1 // pred_check
      _
    $region15: #{nabla_forward.1} parent=1 // pred_check_branch
      %60 = sbr.rel (0) target = $region17
    $region16: #{nabla_forward.1} parent=1 // pred_region
      _
    $region17: #{nabla_forward.1} parent=1 // pred_fallthru
      _
    // Predicated region
    $region18: #{nabla_forward.1} parent=1 // pred_check
      _
    $region19: #{nabla_forward.1} parent=1 // pred_check_branch
      %62 = sbr.rel (0) target = $region21
    $region20: #{nabla_forward.1} parent=1 // pred_region
      _
    $region21: #{nabla_forward.1} parent=1 // pred_fallthru
      _
    %63 = vsyncpa [#allocation3], 1

</llo_original>
